<compile_context>
chip_gen: v5e
topology: v5e:2x2
jax: 0.10.0
libtpu: 0.0.40
codegen_flags: <defaults>
</compile_context>

<pallas_src>
import functools

import jax
import jax.numpy as jnp
from jax import lax
from jax.experimental import pallas as pl
from jax.experimental.pallas import tpu as pltpu


# ----------------------------------------------------------------------------
# Planning helpers
# ----------------------------------------------------------------------------
def _cdiv(a, b):
    return -(-a // b)


def _round_up(x, m):
    return ((x + m - 1) // m) * m


def _default_vmem_limit():
    """Explicit scoped-VMEM limit: well above the defaults (16/32 MiB) but with
    headroom under physical capacity on every generation (v7x has 64 MiB)."""
    cap = None
    try:
        cap = getattr(pltpu.get_tpu_info(), "vmem_capacity_bytes", None)
    except Exception:
        cap = None
    if not cap:
        return 32 * 1024 * 1024
    return int(min(cap * 5 // 8, 48 * 1024 * 1024))


def _plan(bc, hw, *, tk=None, num_cores=2, vmem_limit=None):
    """Pick (tk, num_cores, blocks_per_core, padded_hw, vmem_limit).

    tk is a multiple of 128 lanes; the double-buffered bf16 feature tiles plus
    the resident f32 partial-Gram output must fit the scoped-VMEM limit.
    hw is padded (with zeros, in the wrapper) so every (core, k) block is full.
    """
    if vmem_limit is None:
        vmem_limit = _default_vmem_limit()
    if tk is None:
        fixed = 2 * bc * bc * 4 + (2 << 20)          # out buffers + slack
        budget = max(vmem_limit - fixed, 1 << 20)
        tk = max((budget // (4 * bc)) // 128 * 128, 128)   # 2 bufs * bf16
        tk = min(tk, _round_up(hw, 128))
        rebalance = True
    else:
        tk = _round_up(int(tk), 128)
        rebalance = False
    nk_total = _cdiv(hw, tk)
    nc = num_cores if nk_total >= num_cores else 1
    nk_per_core = _cdiv(nk_total, nc)
    if rebalance:
        # shrink tk to the smallest multiple of 128 covering hw with the same
        # number of blocks -> minimal zero padding
        tk = _round_up(_cdiv(hw, nc * nk_per_core), 128)
    hw_padded = nc * nk_per_core * tk
    return tk, nc, nk_per_core, hw_padded, vmem_limit


def _prep_features(x, hw_padded):
    """(b,c,h,w) -> bf16 (bc, hw_padded) feature matrix, zero-padded along hw.
    Zero columns contribute nothing to F @ F^T, so no in-kernel masking."""
    b, c, h, w = x.shape
    bc, hw = b * c, h * w
    feats = x.reshape(bc, hw).astype(jnp.bfloat16)
    if hw_padded != hw:
        feats = jnp.pad(feats, ((0, 0), (0, hw_padded - hw)))
    return feats


# ----------------------------------------------------------------------------
# Partial-Gram kernel: each core accumulates F_chunk @ F_chunk^T (unnormalized)
# into its own resident (bc, bc) f32 output slab.
# ----------------------------------------------------------------------------
def _partial_gram_kernel(feat_ref, out_ref):
    k = pl.program_id(1)

    @pl.when(k == 0)
    def _():
        out_ref[...] = jnp.zeros_like(out_ref)

    f = feat_ref[...]                               # (bc, tk) bf16 tile
    # trans-B matmul on the MXU: contract the last (K) dim of both operands,
    # bf16 x bf16 -> f32 accumulate; no explicit transpose materialized.
    out_ref[...] += lax.dot_general(
        f, f, (((1,), (1,)), ((), ())), preferred_element_type=jnp.float32)


def _partial_gram(feats, *, bc, tk, nc, nk_per_core, vmem_limit):
    hw_p = feats.shape[1]
    # NOTE(v7x): a pipeline_mode=pl.Buffered(3) sweep on the feature BlockSpec
    # can hide DMA-issue latency once tk is large; left at the default here.
    return pl.pallas_call(
        _partial_gram_kernel,
        out_shape=jax.ShapeDtypeStruct((nc, bc, bc), jnp.float32),
        grid=(nc, nk_per_core),
        in_specs=[pl.BlockSpec((bc, tk),
                               lambda c, k: (0, c * nk_per_core + k))],
        out_specs=pl.BlockSpec((None, bc, bc), lambda c, k: (c, 0, 0)),
        compiler_params=pltpu.CompilerParams(
            dimension_semantics=("parallel", "arbitrary"),
            vmem_limit_bytes=vmem_limit),
        cost_estimate=pl.CostEstimate(
            flops=2 * bc * bc * hw_p,
            transcendentals=0,
            bytes_accessed=2 * bc * hw_p + 4 * nc * bc * bc),
    )(feats)


# ----------------------------------------------------------------------------
# Loss epilogue kernel: combine per-core partials, normalize, MSE vs. target.
# Tiny (O(nc*bc^2) elements), single invocation, everything resident in VMEM.
# ----------------------------------------------------------------------------
def _loss_epilogue_kernel(part_ref, tgt_ref, loss_ref, *, inv_norm):
    g = jnp.sum(part_ref[...], axis=0) * inv_norm   # (bc, bc) f32 Gram
    d = g - tgt_ref[...]
    # mse_loss default reduction='mean' over all bc*bc elements
    loss_ref[0, 0] = jnp.mean(d * d)


# ----------------------------------------------------------------------------
# Public wrappers
# ----------------------------------------------------------------------------
def gram_matrix(x, *, tk=None, num_cores=2, vmem_limit=None):
    """G = (F @ F^T) / (b*c*h*w), F = reshape(x, (b*c, h*w)). f32 output."""
    b, c, h, w = x.shape
    bc, hw = b * c, h * w
    tk, nc, nkpc, hw_p, vmem_limit = _plan(
        bc, hw, tk=tk, num_cores=num_cores, vmem_limit=vmem_limit)
    feats = _prep_features(x, hw_p)
    partials = _partial_gram(feats, bc=bc, tk=tk, nc=nc,
                             nk_per_core=nkpc, vmem_limit=vmem_limit)
    inv_norm = 1.0 / float(bc * hw)
    # tiny epilogue (nc*bc^2 floats) in plain JAX
    return jnp.sum(partials, axis=0) * inv_norm


def _style_loss_forward(x, target_gram, *, tk=None, num_cores=2,
                        vmem_limit=None):
    b, c, h, w = x.shape
    bc, hw = b * c, h * w
    tk, nc, nkpc, hw_p, vmem_limit = _plan(
        bc, hw, tk=tk, num_cores=num_cores, vmem_limit=vmem_limit)
    feats = _prep_features(x, hw_p)
    partials = _partial_gram(feats, bc=bc, tk=tk, nc=nc,
                             nk_per_core=nkpc, vmem_limit=vmem_limit)
    inv_norm = 1.0 / float(bc * hw)
    loss = pl.pallas_call(
        functools.partial(_loss_epilogue_kernel, inv_norm=inv_norm),
        out_shape=jax.ShapeDtypeStruct((1, 1), jnp.float32),
        in_specs=[pl.BlockSpec((nc, bc, bc), lambda: (0, 0, 0)),
                  pl.BlockSpec((bc, bc), lambda: (0, 0))],
        out_specs=pl.BlockSpec((1, 1), lambda: (0, 0)),
        compiler_params=pltpu.CompilerParams(vmem_limit_bytes=vmem_limit),
        cost_estimate=pl.CostEstimate(
            flops=(nc + 3) * bc * bc,
            transcendentals=0,
            bytes_accessed=4 * (nc + 1) * bc * bc + 4),
    )(partials, target_gram)
    return loss[0, 0]


# ----------------------------------------------------------------------------
# Module-equivalent wrapper
# ----------------------------------------------------------------------------
class StyleLoss:
    """JAX/Pallas port of the PyTorch StyleLoss module (forward only).

    NOTE: self.loss is a Python side effect, matching the PyTorch module; under
    jit of a surrounding step it will hold a traced value.
    """

    def __init__(self, target_feature):
        # target Gram computed once at construction (detached constant)
        self.target = gram_matrix(target_feature)
        self.loss = None

    def __call__(self, x):
        self.loss = _style_loss_forward(x, self.target)
        return x  # forward is a pass-through, loss stored as attribute


# ----------------------------------------------------------------------------
# Reference (pure JAX) for a correctness sanity check
# ----------------------------------------------------------------------------
def _gram_ref(x):
    b, c, h, w = x.shape
    f = x.reshape(b * c, h * w).astype(jnp.float32)
    return (f @ f.T) / float(b * c * h * w)


def _loss_ref(x, t):
    return jnp.mean((_gram_ref(x) - _gram_ref(t)) ** 2)


if __name__ == "__main__":
    key = jax.random.PRNGKey(0)
    k1, k2, k3, k4 = jax.random.split(key, 4)

    # shapes consistent with the module: conv-feature maps, NCHW
    b, c, h, w = 2, 4, 16, 16
    target_feature = jax.random.normal(k1, (b, c, h, w), dtype=jnp.float32)
    x = jax.random.normal(k2, (b, c, h, w), dtype=jnp.float32)

    # the kernel deliberately streams features as bf16 (accumulation in f32);
    # compare against a reference with the same quantization
    def _q(v):
        return v.astype(jnp.bfloat16).astype(jnp.float32)

    module = StyleLoss(target_feature)
    out = jax.block_until_ready(module(x))
    loss = jax.block_until_ready(module.loss)

    assert out.shape == x.shape
    assert jnp.allclose(out, x)
    ref_loss = _loss_ref(_q(x), _q(target_feature))
    assert jnp.allclose(loss, ref_loss, rtol=1e-2, atol=1e-6), (loss, ref_loss)

    # Exercise the tiled-K + dual-core path explicitly
    # (hw=256, TK=128 -> 2 blocks split across 2 "cores")
    tgt_g = gram_matrix(target_feature, tk=128, num_cores=2)
    assert jnp.allclose(tgt_g, _gram_ref(_q(target_feature)),
                        rtol=1e-2, atol=1e-5)
    loss_tiled = jax.block_until_ready(
        _style_loss_forward(x, tgt_g, tk=128, num_cores=2))
    assert jnp.allclose(loss_tiled, ref_loss, rtol=1e-2, atol=1e-6)

    # Exercise the zero-padded tail path (hw=200 not a multiple of TK=128)
    b2, c2, h2, w2 = 2, 4, 10, 20
    tf2 = jax.random.normal(k3, (b2, c2, h2, w2), dtype=jnp.float32)
    x2 = jax.random.normal(k4, (b2, c2, h2, w2), dtype=jnp.float32)
    tgt_g2 = gram_matrix(tf2, tk=128, num_cores=2)
    assert jnp.allclose(tgt_g2, _gram_ref(_q(tf2)), rtol=1e-2, atol=1e-5)
    loss2 = jax.block_until_ready(
        _style_loss_forward(x2, tgt_g2, tk=128, num_cores=2))
    ref_loss2 = _loss_ref(_q(x2), _q(tf2))
    assert jnp.allclose(loss2, ref_loss2, rtol=1e-2, atol=1e-6), (loss2, ref_loss2)

    print("KERNEL_OK")
</pallas_src>

<mosaic_0001>
module attributes {stable_mosaic.version = 11 : i64} {
  func.func @_partial_gram_kernel(%arg0: i32, %arg1: i32, %arg2: memref<8x256xbf16, #tpu.memory_space<vmem>>, %arg3: memref<1x8x8xf32, #tpu.memory_space<vmem>>) attributes {dimension_semantics = [#tpu.dimension_semantics<parallel>, #tpu.dimension_semantics<arbitrary>], iteration_bounds = array<i64: 1, 1>, scalar_prefetch = 0 : i64, scratch_operands = 0 : i64, tpu.core_type = #tpu.core_type<tc>, window_params = [{transform_indices = @transform_0, window_bounds = array<i64: 8, 256>}, {transform_indices = @transform_1, window_bounds = array<i64: 1, 8, 8>}]} {
    %c0_i32 = arith.constant 0 : i32
    %0 = arith.cmpi eq, %arg1, %c0_i32 : i32
    %1 = arith.extui %0 : i1 to i32
    %c0_i32_0 = arith.constant 0 : i32
    %2 = arith.cmpi ne, %1, %c0_i32_0 : i32
    scf.if %2 {
      %cst_8 = arith.constant 0.000000e+00 : f32
      %11 = vector.broadcast %cst_8 : f32 to vector<8x8xf32>
      %c0_9 = arith.constant 0 : index
      %c0_10 = arith.constant 0 : index
      %c0_11 = arith.constant 0 : index
      %12 = vector.load %arg3[%c0_9, %c0_10, %c0_11] : memref<1x8x8xf32, #tpu.memory_space<vmem>>, vector<1x8x8xf32>
      %13 = vector.shape_cast %12 : vector<1x8x8xf32> to vector<8x8xf32>
      %14 = vector.shape_cast %11 : vector<8x8xf32> to vector<1x8x8xf32>
      tpu.vector_store %arg3[%c0_9, %c0_10, %c0_11], %14 {strides = array<i32>} : memref<1x8x8xf32, #tpu.memory_space<vmem>>, vector<1x8x8xf32>,
    } else {
    }
    %c0 = arith.constant 0 : index
    %c0_1 = arith.constant 0 : index
    %3 = vector.load %arg2[%c0, %c0_1] : memref<8x256xbf16, #tpu.memory_space<vmem>>, vector<8x256xbf16>
    %c0_2 = arith.constant 0 : index
    %c0_3 = arith.constant 0 : index
    %c0_4 = arith.constant 0 : index
    %4 = vector.load %arg3[%c0_2, %c0_3, %c0_4] : memref<1x8x8xf32, #tpu.memory_space<vmem>>, vector<1x8x8xf32>
    %5 = vector.shape_cast %4 : vector<1x8x8xf32> to vector<8x8xf32>
    %cst = arith.constant dense<0.000000e+00> : vector<8x8xf32>
    %6 = tpu.matmul %3, %3, %cst {dimension_numbers = #tpu.dot_dimension_numbers<[1], [1], [0], [0], [0, 0, 1, 0], [], []>} : vector<8x256xbf16>, vector<8x256xbf16>, vector<8x8xf32> -> vector<8x8xf32>
    %7 = arith.addf %5, %6 : vector<8x8xf32>
    %c0_5 = arith.constant 0 : index
    %c0_6 = arith.constant 0 : index
    %c0_7 = arith.constant 0 : index
    %8 = vector.load %arg3[%c0_5, %c0_6, %c0_7] : memref<1x8x8xf32, #tpu.memory_space<vmem>>, vector<1x8x8xf32>
    %9 = vector.shape_cast %8 : vector<1x8x8xf32> to vector<8x8xf32>
    %10 = vector.shape_cast %7 : vector<8x8xf32> to vector<1x8x8xf32>
    tpu.vector_store %arg3[%c0_5, %c0_6, %c0_7], %10 {strides = array<i32>} : memref<1x8x8xf32, #tpu.memory_space<vmem>>, vector<1x8x8xf32>,
    return
  }
  func.func @transform_0(%arg0: i32, %arg1: i32) -> (i32, i32) {
    %c1_i32 = arith.constant 1 : i32
    %0 = arith.muli %arg0, %c1_i32 : i32
    %1 = arith.addi %0, %arg1 : i32
    %c0_i32 = arith.constant 0 : i32
    %c0_i32_0 = arith.constant 0 : i32
    return %c0_i32, %1 : i32, i32
  }
  func.func @transform_1(%arg0: i32, %arg1: i32) -> (i32, i32, i32) {
    %c0_i32 = arith.constant 0 : i32
    %c0_i32_0 = arith.constant 0 : i32
    %c0_i32_1 = arith.constant 0 : i32
    return %arg0, %c0_i32, %c0_i32_0 : i32, i32, i32
  }
}

</mosaic_0001>

<llo_original>
// kernel: tpu_custom_call.1
$region0: #{tpu_custom_call.1}
  #allocation0 [shape = 'u32[]', space=smem, size = 0x4, offset = 0x4, fixed_abs, tag = 'smem constant byte address 0x4 - core index']
  #allocation1 [shape = 'u32[72,128]{1,0:T(1,128)}', space=vmem, size = 0x9000, scoped, tag = 'internal scratch']
  %s0 = inlined_call_operand.hbm [shape: bf16[8,256], index: 0, kind: input, shape index: {}]
  %s1 = inlined_call_operand.hbm [shape: f32[1,8,8], index: 1, kind: output, shape index: {}]
  %s2 = sld [smem:[#allocation0]]
  $region22: #{tpu_custom_call.1} parent=0
    _
  %s4 = ssub.s32 1, %s2
  %s5 = scalar_select 0, %s4, %s2
  $region1: #{tpu_custom_call.1} parent=0
    #allocation2 [shape = 'u8[4096]{0}', space=vmem, size = 0x1000, scoped, tag = 'input window, operand 0, single buffered']
    #allocation3 [shape = 's32[1]{0}', space=sflag, size = 0x4, scoped, tag = 'scoped memory for tpu_custom_call.1']
    #allocation4 [shape = 's32[1]{0}', space=sflag, size = 0x4, scoped, tag = 'scoped memory for tpu_custom_call.1']
    #allocation5 [shape = 'u8[4096]{0}', space=vmem, size = 0x1000, scoped, tag = 'output window, operand 0, single buffered']
    %6 = vsyncpa [#allocation3], 0
    %7 = vsyncpa [#allocation4], 0
    // Predicated region
    $region2: #{tpu_custom_call.1} parent=1 // pred_check
      _
    $region3: #{tpu_custom_call.1} parent=1 // pred_check_branch
      %9 = sbr.rel (0) target = $region5
    $region4: #{tpu_custom_call.1} parent=1 // pred_region
      %s10 = sadd.s32 0, 0
      %s11 = smul.u32 2, %s10
      %13 = vsyncadd [#allocation3], 0
      %s14 = smul.addr %s11, 4
      %s15 = scalar_lea.hbm %s0, %s14
      %s17 = sshll.u32 %s15, 4
      %s18 = int_to_ptr.hbm [resolvable:$true] %s17
      %s19 = sshll.u32 [#allocation2], 4
      %s20 = int_to_ptr.vmem [resolvable:$true] %s19
      %22 = dma.hbm_to_vmem [thread:$0]  %s18, 128, %s20, [#allocation3]
    $region5: #{tpu_custom_call.1} parent=1 // pred_fallthru
      _
    // Predicated region
    $region6: #{tpu_custom_call.1} parent=1 // pred_check
      _
    $region7: #{tpu_custom_call.1} parent=1 // pred_check_branch
      %24 = sbr.rel (0) target = $region9
    $region8: #{tpu_custom_call.1} parent=1 // pred_region
      %26 = dma.done [#allocation3], 128
    $region9: #{tpu_custom_call.1} parent=1 // pred_fallthru
      _
    %s27 = sadd.s32 0, 0
    %s28 = smul.u32 2, %s27
    %p30 = scmp.eq.s32.totalorder 0, 0
    // Predicated region
    $region10: #{tpu_custom_call.1} parent=1 // pred_check
      %p31 = pneg %p30
    $region11: #{tpu_custom_call.1} parent=1 // pred_check_branch
      %33 = sbr.rel (%p31) target = $region13
    $region12: #{tpu_custom_call.1} parent=1 // pred_region
      %vm34 = vcmask 64512
      %35 = vst.msk [vmem:[#allocation5] sm:$0xff] %vm34, 0.0
    $region13: #{tpu_custom_call.1} parent=1 // pred_fallthru
      _
    %v36 = vld [vmem:[#allocation2] sm:$0xff]
    %v37 = vld [vmem:[#allocation5] sm:$0xff]
    %v39 = vunpack.c.l.b16 %v36
    %v40 = vunpack.c.h.b16 %v36
    %v41 = vpack.c.b16 %v39, %v39
    %v42 = vpack.c.b16 %v40, %v40
    %45 = vmatpush.bf16.xpose.msra.mxu0 0
    %46 = vmatpush.bf16.xpose.msra.mxu0 0
    %47 = vmatpush.bf16.xpose.msra.mxu0 0
    %48 = vmatpush.bf16.xpose.msra.mxu0 0
    %49 = vmatpush.bf16.xpose.msra.mxu0 0
    %50 = vmatpush.bf16.xpose.msra.mxu0 0
    %51 = vmatpush.bf16.xpose.msra.mxu0 0
    %52 = vmatpush.bf16.xpose.msra.mxu0 %v41
    %53 = vmatmul.bf16.gmra.mxu0 %v41
    %v54 = vpop.f32.mrf.mxu0
    %v55 = vadd.f32 0.0, %v54
    %v56 = vpop.f32.mrf.mxu0
    %57 = vdwg.mxu0
    %58 = vmatpush.bf16.xpose.msra.mxu0 0
    %59 = vmatpush.bf16.xpose.msra.mxu0 0
    %60 = vmatpush.bf16.xpose.msra.mxu0 0
    %61 = vmatpush.bf16.xpose.msra.mxu0 0
    %62 = vmatpush.bf16.xpose.msra.mxu0 0
    %63 = vmatpush.bf16.xpose.msra.mxu0 0
    %64 = vmatpush.bf16.xpose.msra.mxu0 0
    %65 = vmatpush.bf16.xpose.msra.mxu0 %v42
    %66 = vmatmul.bf16.gmra.mxu0 %v42
    %v67 = vpop.f32.mrf.mxu0
    %v68 = vadd.f32 %v55, %v67
    %v69 = vpop.f32.mrf.mxu0
    %70 = vdwg.mxu0
    %v71 = vadd.f32 %v37, %v68
    %vm72 = vcmask 64512
    %73 = vst.msk [vmem:[#allocation5] sm:$0xff] %vm72, %v71
    // Predicated region
    $region14: #{tpu_custom_call.1} parent=1 // pred_check
      _
    $region15: #{tpu_custom_call.1} parent=1 // pred_check_branch
      %75 = sbr.rel (0) target = $region17
    $region16: #{tpu_custom_call.1} parent=1 // pred_region
      %77 = vsyncadd [#allocation4], 0
      %s79 = sshll.u32 [#allocation5], 4
      %s80 = int_to_ptr.vmem [resolvable:$true] %s79
      %s81 = sshll.u32 %s1, 4
      %s82 = int_to_ptr.hbm [resolvable:$true] %s81
      %84 = dma.vmem_to_hbm [thread:$0]  %s80, 128, %s82, [#allocation4]
    $region17: #{tpu_custom_call.1} parent=1 // pred_fallthru
      _
    // Predicated region
    $region18: #{tpu_custom_call.1} parent=1 // pred_check
      _
    $region19: #{tpu_custom_call.1} parent=1 // pred_check_branch
      %86 = sbr.rel (0) target = $region21
    $region20: #{tpu_custom_call.1} parent=1 // pred_region
      %88 = dma.done [#allocation4], 128
    $region21: #{tpu_custom_call.1} parent=1 // pred_fallthru
      _
    %89 = vsyncpa [#allocation3], 1
    %90 = vsyncpa [#allocation4], 1

</llo_original>
